<compile_context>
chip_gen: v7x
topology: tpu7x:2x2x1
jax: 0.10.0
libtpu: 0.0.40
codegen_flags: <defaults>
</compile_context>

<pallas_src>
import jax
import jax.numpy as jnp
from jax import lax
from jax.experimental import pallas as pl
from jax.experimental.pallas import tpu as pltpu


def _round_up(x, m):
    return ((x + m - 1) // m) * m


def _pick_row_tile(hw, kp, cp, budget_bytes=12 * 1024 * 1024):
    """Largest row tile (multiple of 8, <= 1024) whose per-step VMEM estimate
    (double-buffered patches/out + weights + scale + stats) fits the budget.
    The budget leaves headroom even under v5e's 16 MiB default scoped VMEM."""
    cap = min(1024, _round_up(max(hw, 8), 8))
    for cand in (1024, 512, 256, 128, 64, 32, 16, 8):
        if cand > cap:
            continue
        est = (2 * cand * kp * 2        # patches, bf16, double buffered
               + 2 * kp * cp * 2        # packed weights, bf16, double buffered
               + 2 * cand * cp * 2      # bf16 output tile, double buffered
               + 2 * cand * 4           # per-row renorm scale, f32
               + 2 * 8 * cp * 4)        # stats tile, f32
        if est <= budget_bytes:
            return cand
    return 8


# -----------------------------------------------------------------------------
# Kernel: partial conv as a single im2col MXU matmul per tile, renormalization
# / hole handling via a per-pixel scale factor, plus BatchNorm partial
# statistics (sum, sum of squares per channel) computed in f32 before the
# bf16 store.
# -----------------------------------------------------------------------------
def make_pconv_kernel(c_pad):
    def pconv_kernel(p_ref, w_ref, s_ref, out_ref, stats_ref):
        # p_ref    : (1, TR, Kp)   bf16  im2col taps of x*mask
        # w_ref    : (Kp, CP)      bf16  packed conv weights (zero padded)
        # s_ref    : (1, TR, 1)    f32   slide_winsize / mask_sum (0 at holes)
        # out_ref  : (1, TR, CP)   bf16  partial-conv output (pre-BN)
        # stats_ref: (1, 1, 8, CP) f32   row0 = sum(h), row1 = sum(h*h)
        acc = jnp.dot(p_ref[0], w_ref[...],
                      preferred_element_type=jnp.float32)    # one MXU matmul
        h = acc * s_ref[0]                                   # renorm + holes

        # BatchNorm partial statistics, f32, before the bf16 cast/store.
        # Note: single-pass sum/sumsq can cancel at very large N*H*W; for
        # production resolutions switch to per-tile centered sums + Chan merge.
        s = jnp.sum(h, axis=0, keepdims=True)                # (1, CP)
        ss = jnp.sum(h * h, axis=0, keepdims=True)           # (1, CP)
        row = lax.broadcasted_iota(jnp.int32, (8, c_pad), 0)
        stats = jnp.where(row == 0, s, jnp.where(row == 1, ss, 0.0))
        stats_ref[...] = stats.reshape(1, 1, 8, c_pad)

        out_ref[0] = h.astype(out_ref.dtype)

    return pconv_kernel


# -----------------------------------------------------------------------------
# Wrapper: PCBActiv(in_ch, out_ch, sample='none-3', activ='relu', conv_bias=False)
# -----------------------------------------------------------------------------
def pcb_activ_forward(x_nchw, mask_nchw, conv_w_oihw, bn_gamma, bn_beta,
                      eps=1e-5):
    N, Cin, H, W = x_nchw.shape
    Cout = conv_w_oihw.shape[0]
    HW = H * W
    K = 9 * Cin                                # taps * in-channels
    Kp = _round_up(K, 128)                     # lane-aligned contraction dim
    CP = _round_up(Cout, 128)                  # lane-dense output width
    slide_winsize = float(K)

    TR = _pick_row_tile(HW, Kp, CP)
    HW_pad = _round_up(HW, TR)
    nt = HW_pad // TR

    # ---- XLA-side preprocessing --------------------------------------------
    x = jnp.transpose(x_nchw, (0, 2, 3, 1)).astype(jnp.float32)      # NHWC
    m = jnp.transpose(mask_nchw, (0, 2, 3, 1)).astype(jnp.float32)   # NHWC

    # 3x3 window-sum of the mask via a box filter on the channel-summed mask
    # (the PyTorch mask_conv weight is all-ones, so every output channel is
    # identical).  new_mask and the renormalization factor are conv-independent.
    msc = jnp.pad(jnp.sum(m, axis=-1), ((0, 0), (1, 1), (1, 1)))
    msum = sum(msc[:, ky:ky + H, kx:kx + W]
               for ky in range(3) for kx in range(3))                 # (N,H,W)
    holes = msum == 0.0
    new_mask_hw = jnp.where(holes, 0.0, 1.0).astype(jnp.float32)
    scale = jnp.where(holes, 0.0,
                      slide_winsize / jnp.where(holes, 1.0, msum))    # (N,H,W)
    scale = jnp.pad(scale.reshape(N, HW), ((0, 0), (0, HW_pad - HW)))
    scale = scale.reshape(N, HW_pad, 1)

    # im2col of the masked input only (the mask taps are no longer duplicated).
    # TODO(synk): for large Cin a halo-tiled in-kernel tap accumulation would
    # avoid materializing this 9x-inflated slab; im2col is kept for small Cin.
    xm_pad = jnp.pad(x * m, ((0, 0), (1, 1), (1, 1), (0, 0)))
    cols = [xm_pad[:, ky:ky + H, kx:kx + W, :]
            for ky in range(3) for kx in range(3)]
    patches = jnp.concatenate(cols, axis=-1).reshape(N, HW, K)
    patches = jnp.pad(patches, ((0, 0), (0, HW_pad - HW), (0, Kp - K)))
    patches = patches.astype(jnp.bfloat16)                # (N, HW_pad, Kp)

    # (Cout,Cin,3,3) -> (ky,kx,ci,co) -> (K,Cout), zero-padded to (Kp, CP).
    w = jnp.transpose(conv_w_oihw, (2, 3, 1, 0)).reshape(K, Cout)
    wc = jnp.zeros((Kp, CP), jnp.float32).at[:K, :Cout].set(
        w.astype(jnp.float32)).astype(jnp.bfloat16)

    # ---- Pallas kernel: partial conv + BN partial statistics ---------------
    out, stats = pl.pallas_call(
        make_pconv_kernel(CP),
        out_shape=(jax.ShapeDtypeStruct((N, HW_pad, CP), jnp.bfloat16),
                   jax.ShapeDtypeStruct((N, nt, 8, CP), jnp.float32)),
        grid_spec=pltpu.PrefetchScalarGridSpec(
            num_scalar_prefetch=0,
            grid=(N, nt),
            in_specs=[
                pl.BlockSpec((1, TR, Kp), lambda n, t: (n, t, 0)),
                pl.BlockSpec((Kp, CP), lambda n, t: (0, 0)),
                pl.BlockSpec((1, TR, 1), lambda n, t: (n, t, 0)),
            ],
            out_specs=[
                pl.BlockSpec((1, TR, CP), lambda n, t: (n, t, 0)),
                pl.BlockSpec((1, 1, 8, CP), lambda n, t: (n, t, 0, 0)),
            ],
        ),
        compiler_params=pltpu.CompilerParams(
            dimension_semantics=("parallel", "parallel"),
            vmem_limit_bytes=48 * 1024 * 1024),
    )(patches, wc, scale)

    # ---- BN batch statistics (tiny reduction; padded rows contribute 0) ----
    cnt = jnp.float32(N * HW)
    sum_c = jnp.sum(stats[:, :, 0, :Cout], axis=(0, 1))               # (Cout,)
    sumsq_c = jnp.sum(stats[:, :, 1, :Cout], axis=(0, 1))             # (Cout,)
    mean = sum_c / cnt
    var = jnp.maximum(sumsq_c / cnt - mean * mean, 0.0)   # biased, as BN fwd
    bn_scale = bn_gamma.astype(jnp.float32) * lax.rsqrt(var + eps)
    bn_bias = bn_beta.astype(jnp.float32) - mean * bn_scale

    # ---- BN apply + ReLU fused into the slice + NHWC->NCHW epilogue --------
    h_lin = out[:, :HW, :Cout].astype(jnp.float32)                    # (N,HW,Cout)
    y = jnp.maximum(h_lin * bn_scale + bn_bias, 0.0)
    h_nchw = jnp.transpose(y.reshape(N, H, W, Cout), (0, 3, 1, 2))
    new_mask_nchw = jnp.broadcast_to(new_mask_hw[:, None, :, :],
                                     (N, Cout, H, W))
    return h_nchw, new_mask_nchw


# -----------------------------------------------------------------------------
# Pure-JAX reference (NCHW, PyTorch semantics).  Conv inputs are rounded to
# bf16 to mirror the kernel's bf16-MXU / f32-accumulate numerics, and the
# pre-BN activation is rounded to bf16 to mirror the bf16 intermediate store
# (BN statistics stay f32, as in the kernel); everything else is f32.
# -----------------------------------------------------------------------------
def pcb_activ_reference(x, m, w_oihw, gamma, beta, eps=1e-5):
    Cin = x.shape[1]
    slide = float(Cin * 9)
    xm = (x * m).astype(jnp.bfloat16).astype(jnp.float32)
    wr = w_oihw.astype(jnp.bfloat16).astype(jnp.float32)
    dn = ('NCHW', 'OIHW', 'NCHW')
    out = lax.conv_general_dilated(xm, wr, (1, 1), [(1, 1), (1, 1)],
                                   dimension_numbers=dn,
                                   precision=lax.Precision.HIGHEST)
    msum = lax.conv_general_dilated(m, jnp.ones_like(w_oihw), (1, 1),
                                    [(1, 1), (1, 1)], dimension_numbers=dn,
                                    precision=lax.Precision.HIGHEST)
    holes = msum == 0.0
    scale = jnp.where(holes, 0.0, slide / jnp.where(holes, 1.0, msum))
    h = out * scale
    new_mask = jnp.where(holes, 0.0, 1.0)
    # BatchNorm2d training-mode batch stats (biased variance), then ReLU.
    mean = jnp.mean(h, axis=(0, 2, 3), keepdims=True)
    var = jnp.mean((h - mean) ** 2, axis=(0, 2, 3), keepdims=True)
    h_b = h.astype(jnp.bfloat16).astype(jnp.float32)   # bf16 intermediate
    hn = (h_b - mean) * lax.rsqrt(var + eps)
    hn = hn * gamma.reshape(1, -1, 1, 1) + beta.reshape(1, -1, 1, 1)
    return jnp.maximum(hn, 0.0), new_mask


if __name__ == "__main__":
    key = jax.random.PRNGKey(0)
    k_x, k_m, k_w = jax.random.split(key, 3)

    N, Cin, Cout, H, W = 2, 4, 8, 16, 16

    x = jax.random.normal(k_x, (N, Cin, H, W), dtype=jnp.float32)
    mask = (jax.random.uniform(k_m, (N, Cin, H, W)) > 0.3).astype(jnp.float32)
    # Carve out a solid hole region so the hole-handling path is exercised.
    mask = mask.at[:, :, 4:10, 5:11].set(0.0)

    # Deterministic synthetic parameters (gaussian conv weights; BatchNorm
    # gamma=1, beta=0 as in PyTorch default init; conv_bias=False).
    conv_w = 0.1 * jax.random.normal(k_w, (Cout, Cin, 3, 3), dtype=jnp.float32)
    bn_gamma = jnp.ones((Cout,), dtype=jnp.float32)
    bn_beta = jnp.zeros((Cout,), dtype=jnp.float32)

    h, h_mask = pcb_activ_forward(x, mask, conv_w, bn_gamma, bn_beta)
    h = jax.block_until_ready(h)
    h_mask = jax.block_until_ready(h_mask)

    h_ref, mask_ref = pcb_activ_reference(x, mask, conv_w, bn_gamma, bn_beta)
    assert jnp.allclose(h, h_ref, atol=2e-3, rtol=2e-3), "output mismatch"
    assert jnp.allclose(h_mask, mask_ref), "mask mismatch"

    print("KERNEL_OK")
</pallas_src>

<mosaic_0001>
module attributes {stable_mosaic.version = 11 : i64} {
  func.func @pconv_kernel(%arg0: i32, %arg1: i32, %arg2: memref<1x256x128xbf16, #tpu.memory_space<vmem>>, %arg3: memref<128x128xbf16, #tpu.memory_space<vmem>>, %arg4: memref<1x256x1xf32, #tpu.memory_space<vmem>>, %arg5: memref<1x256x128xbf16, #tpu.memory_space<vmem>>, %arg6: memref<1x1x8x128xf32, #tpu.memory_space<vmem>>) attributes {dimension_semantics = [#tpu.dimension_semantics<parallel>, #tpu.dimension_semantics<parallel>], iteration_bounds = array<i64: 2, 1>, scalar_prefetch = 0 : i64, scratch_operands = 0 : i64, tpu.core_type = #tpu.core_type<tc>, window_params = [{transform_indices = @transform_0, window_bounds = array<i64: 1, 256, 128>}, {pipeline_mode = #tpu.pipeline_mode<synchronous>, transform_indices = @transform_1, window_bounds = array<i64: 128, 128>}, {transform_indices = @transform_2, window_bounds = array<i64: 1, 256, 1>}, {transform_indices = @transform_3, window_bounds = array<i64: 1, 256, 128>}, {transform_indices = @transform_4, window_bounds = array<i64: 1, 1, 8, 128>}]} {
    %c0 = arith.constant 0 : index
    %c0_0 = arith.constant 0 : index
    %c0_1 = arith.constant 0 : index
    %0 = vector.load %arg2[%c0, %c0_0, %c0_1] : memref<1x256x128xbf16, #tpu.memory_space<vmem>>, vector<1x256x128xbf16>
    %1 = vector.shape_cast %0 : vector<1x256x128xbf16> to vector<256x128xbf16>
    %c0_2 = arith.constant 0 : index
    %c0_3 = arith.constant 0 : index
    %2 = vector.load %arg3[%c0_2, %c0_3] : memref<128x128xbf16, #tpu.memory_space<vmem>>, vector<128x128xbf16>
    %cst = arith.constant dense<0.000000e+00> : vector<256x128xf32>
    %3 = tpu.matmul %1, %2, %cst {dimension_numbers = #tpu.dot_dimension_numbers<[1], [0], [0], [1], [0, 0, 1, 1], [], []>} : vector<256x128xbf16>, vector<128x128xbf16>, vector<256x128xf32> -> vector<256x128xf32>
    %c0_4 = arith.constant 0 : index
    %c0_5 = arith.constant 0 : index
    %c0_6 = arith.constant 0 : index
    %4 = vector.load %arg4[%c0_4, %c0_5, %c0_6] : memref<1x256x1xf32, #tpu.memory_space<vmem>>, vector<1x256x1xf32>
    %5 = vector.shape_cast %4 : vector<1x256x1xf32> to vector<256x1xf32>
    %6 = vector.broadcast %5 : vector<256x1xf32> to vector<256x128xf32>
    %7 = arith.mulf %3, %6 : vector<256x128xf32>
    %cst_7 = arith.constant dense<0.000000e+00> : vector<128xf32>
    %8 = vector.multi_reduction <add>, %7, %cst_7 [0] : vector<256x128xf32> to vector<128xf32>
    %9 = vector.shape_cast %8 : vector<128xf32> to vector<1x128xf32>
    %10 = arith.mulf %7, %7 : vector<256x128xf32>
    %cst_8 = arith.constant dense<0.000000e+00> : vector<128xf32>
    %11 = vector.multi_reduction <add>, %10, %cst_8 [0] : vector<256x128xf32> to vector<128xf32>
    %12 = vector.shape_cast %11 : vector<128xf32> to vector<1x128xf32>
    %13 = tpu.iota {dimensions = array<i32: 0>} : vector<8x128xi32>
    %c0_i32 = arith.constant 0 : i32
    %14 = vector.broadcast %c0_i32 : i32 to vector<8x128xi32>
    %15 = arith.cmpi eq, %13, %14 : vector<8x128xi32>
    %c1_i32 = arith.constant 1 : i32
    %16 = vector.broadcast %c1_i32 : i32 to vector<8x128xi32>
    %17 = arith.cmpi eq, %13, %16 : vector<8x128xi32>
    %cst_9 = arith.constant 0.000000e+00 : f32
    %18 = vector.shape_cast %12 : vector<1x128xf32> to vector<1x128xf32>
    %19 = vector.broadcast %18 : vector<1x128xf32> to vector<8x128xf32>
    %20 = vector.broadcast %cst_9 : f32 to vector<8x128xf32>
    %21 = arith.select %17, %19, %20 : vector<8x128xi1>, vector<8x128xf32>
    %22 = vector.shape_cast %9 : vector<1x128xf32> to vector<1x128xf32>
    %23 = vector.broadcast %22 : vector<1x128xf32> to vector<8x128xf32>
    %24 = arith.select %15, %23, %21 : vector<8x128xi1>, vector<8x128xf32>
    %25 = vector.shape_cast %24 : vector<8x128xf32> to vector<1x1x8x128xf32>
    %c0_10 = arith.constant 0 : index
    %c0_11 = arith.constant 0 : index
    %c0_12 = arith.constant 0 : index
    %c0_13 = arith.constant 0 : index
    %26 = vector.load %arg6[%c0_10, %c0_11, %c0_12, %c0_13] : memref<1x1x8x128xf32, #tpu.memory_space<vmem>>, vector<1x1x8x128xf32>
    tpu.vector_store %arg6[%c0_10, %c0_11, %c0_12, %c0_13], %25 {strides = array<i32>} : memref<1x1x8x128xf32, #tpu.memory_space<vmem>>, vector<1x1x8x128xf32>,
    %27 = arith.truncf %7 : vector<256x128xf32> to vector<256x128xbf16>
    %c0_14 = arith.constant 0 : index
    %c0_15 = arith.constant 0 : index
    %c0_16 = arith.constant 0 : index
    %28 = vector.load %arg5[%c0_14, %c0_15, %c0_16] : memref<1x256x128xbf16, #tpu.memory_space<vmem>>, vector<1x256x128xbf16>
    %29 = vector.shape_cast %28 : vector<1x256x128xbf16> to vector<256x128xbf16>
    %30 = vector.shape_cast %27 : vector<256x128xbf16> to vector<1x256x128xbf16>
    tpu.vector_store %arg5[%c0_14, %c0_15, %c0_16], %30 {strides = array<i32>} : memref<1x256x128xbf16, #tpu.memory_space<vmem>>, vector<1x256x128xbf16>,
    return
  }
  func.func @transform_0(%arg0: i32, %arg1: i32) -> (i32, i32, i32) {
    %c0_i32 = arith.constant 0 : i32
    %c0_i32_0 = arith.constant 0 : i32
    return %arg0, %arg1, %c0_i32 : i32, i32, i32
  }
  func.func @transform_1(%arg0: i32, %arg1: i32) -> (i32, i32) {
    %c0_i32 = arith.constant 0 : i32
    %c0_i32_0 = arith.constant 0 : i32
    %c0_i32_1 = arith.constant 0 : i32
    return %c0_i32, %c0_i32_0 : i32, i32
  }
  func.func @transform_2(%arg0: i32, %arg1: i32) -> (i32, i32, i32) {
    %c0_i32 = arith.constant 0 : i32
    %c0_i32_0 = arith.constant 0 : i32
    return %arg0, %arg1, %c0_i32 : i32, i32, i32
  }
  func.func @transform_3(%arg0: i32, %arg1: i32) -> (i32, i32, i32) {
    %c0_i32 = arith.constant 0 : i32
    %c0_i32_0 = arith.constant 0 : i32
    return %arg0, %arg1, %c0_i32 : i32, i32, i32
  }
  func.func @transform_4(%arg0: i32, %arg1: i32) -> (i32, i32, i32, i32) {
    %c0_i32 = arith.constant 0 : i32
    %c0_i32_0 = arith.constant 0 : i32
    %c0_i32_1 = arith.constant 0 : i32
    return %arg0, %arg1, %c0_i32, %c0_i32_0 : i32, i32, i32, i32
  }
}

</mosaic_0001>

<llo_original>
// kernel: tpu_custom_call.1
$region0: #{tpu_custom_call.1}
  #allocation0 [shape = 'u32[]', space=smem, size = 0x4, offset = 0x4, fixed_abs, tag = 'smem constant byte address 0x4 - core index']
  #allocation1 [shape = 'u32[144,128]{1,0:T(1,128)}', space=vmem, size = 0x12000, scoped, tag = 'internal scratch']
  %s0 = inlined_call_operand.vmem [shape: bf16[2,256,128], index: 0, kind: input, shape index: {}]
  %s1 = inlined_call_operand.vmem [shape: bf16[128,128], index: 1, kind: input, shape index: {}]
  %s2 = inlined_call_operand.vmem [shape: f32[2,256,1], index: 2, kind: input, shape index: {}]
  %s3 = inlined_call_operand.hbm [shape: bf16[2,256,128], index: 3, kind: output, shape index: {0}]
  %s4 = inlined_call_operand.hbm [shape: f32[2,1,8,128], index: 4, kind: output, shape index: {1}]
  %5 = xla_tuple %s3, %s4
  %s6 = sld [smem:[#allocation0]]
  $region53: #{tpu_custom_call.1} parent=0
    _
  %s8 = ssub.s32 1, %s6
  %s9 = scalar_select 0, %s8, %s6
  $region1: #{tpu_custom_call.1} parent=0
    #allocation2 [shape = 'u8[131072]{0}', space=vmem, size = 0x20000, scoped, tag = 'output window, operand 0']
    #allocation3 [shape = 's32[2]{0}', space=sflag, size = 0x8, scoped, tag = 'scoped memory for tpu_custom_call.1']
    #allocation4 [shape = 'u8[8192]{0}', space=vmem, size = 0x2000, scoped, tag = 'output window, operand 1']
    #allocation5 [shape = 's32[2]{0}', space=sflag, size = 0x8, scoped, tag = 'scoped memory for tpu_custom_call.1']
    %10 = vsyncpa [#allocation3], 0
    %s11 = scalar_lea.sflag [#allocation3], 1
    %12 = vsyncpa %s11, 0
    %13 = vsyncpa [#allocation5], 0
    %s14 = scalar_lea.sflag [#allocation5], 1
    %15 = vsyncpa %s14, 0
    loop: start=0, step=1, limit=4
    $region2: #{tpu_custom_call.1} parent=1 // loop_pre_header
      _
    $region3: #{tpu_custom_call.1} parent=1 // loop_header
      %s17 = sphi 0, %s21
      %p18 = scmp.ge.s32.totalorder %s17, 4
      %s24 = sphi 0, %s36
      %s25 = sphi 0, %s32
      %s26 = sphi 0, %s24
      %s27 = sphi 0, %s25
      %s28 = sphi 0, %s26
      %s29 = sphi 0, %s27
      %s41 = sphi 0, %s43
      %s44 = sphi 0, %s41
      %s45 = sphi 0, %s44
      %s61 = sphi 0, %s45
      %s65 = sphi 0, %s65
      %s67 = sphi 0, %s65
      %s68 = sphi 0, %s67
      %s82 = sphi 0, %s68
      %s90 = sphi 0, %s92
      %s93 = sphi 0, %s90
      %s94 = sphi 0, %s93
      %s110 = sphi 0, %s94
      %s118 = sphi 0, %s120
      %s121 = sphi 0, %s118
      %s122 = sphi 0, %s121
      %s138 = sphi 0, %s122
      %s146 = sphi 0, %s148
      %s149 = sphi 0, %s146
      %s150 = sphi 0, %s149
      %s166 = sphi 0, %s150
    $region4: #{tpu_custom_call.1} parent=1 // loop_header_branch
      %20 = sbr.rel (%p18) target = $region8
    $region5: #{tpu_custom_call.1} parent=1 // loop_body
      %s22 = ssub.s32 %s17, 1
      %s23 = ssub.s32 %s17, 2
      %s30 = sadd.s32 1, %s25
      %p31 = scmp.ge.s32.totalorder %s30, 1
      %s32 = scalar_select %p31, 0, %s30
      %s33 = sadd.s32 1, %s24
      %s34 = scalar_select %p31, %s33, %s24
      %p35 = scmp.ge.s32.totalorder %s34, 2
      %s36 = scalar_select %p35, 0, %s34
      %s37 = ssub.s32 %s24, %s36
      %s38 = ssub.s32 %s25, %s32
      %s39 = sor.u32 %s37, %s38
      %p40 = scmp.eq.s32.totalorder %s39, 0
      %s42 = sadd.s32 %s41, 1
      %s43 = scalar_select %p40, %s41, %s42
      %p46 = pneg %p40
      %p47 = scmp.eq.s32.totalorder %s17, 1
      %p48 = por %p46, %p47
      %p49 = scmp.ne.s32.totalorder %s41, %s44
      %p50 = scmp.eq.s32.totalorder %s17, 0
      %p51 = por %p49, %p50
      %p52 = scmp.ne.s32.totalorder %s41, %s44
      %p53 = scmp.eq.s32.totalorder %s22, 1
      %p54 = por %p52, %p53
      %p55 = scmp.ne.s32.totalorder %s44, %s45
      %p56 = scmp.eq.s32.totalorder %s22, 0
      %p57 = por %p55, %p56
      %p58 = scmp.ne.s32.totalorder %s44, %s45
      %p59 = scmp.eq.s32.totalorder %s23, 1
      %p60 = por %p58, %p59
      %p62 = scmp.ne.s32.totalorder %s45, %s61
      %p63 = scmp.eq.s32.totalorder %s23, 0
      %p64 = por %p62, %p63
      %s66 = sadd.s32 %s65, 1
      %p69 = scmp.eq.s32.totalorder %s17, 1
      %p70 = scmp.ne.s32.totalorder %s65, %s67
      %p71 = scmp.eq.s32.totalorder %s17, 0
      %p72 = por %p70, %p71
      %p73 = scmp.ne.s32.totalorder %s65, %s67
      %p74 = scmp.eq.s32.totalorder %s22, 1
      %p75 = por %p73, %p74
      %p76 = scmp.ne.s32.totalorder %s67, %s68
      %p77 = scmp.eq.s32.totalorder %s22, 0
      %p78 = por %p76, %p77
      %p79 = scmp.ne.s32.totalorder %s67, %s68
      %p80 = scmp.eq.s32.totalorder %s23, 1
      %p81 = por %p79, %p80
      %p83 = scmp.ne.s32.totalorder %s68, %s82
      %p84 = scmp.eq.s32.totalorder %s23, 0
      %p85 = por %p83, %p84
      %s86 = ssub.s32 %s24, %s36
      %s87 = ssub.s32 %s25, %s32
      %s88 = sor.u32 %s86, %s87
      %p89 = scmp.eq.s32.totalorder %s88, 0
      %s91 = sadd.s32 %s90, 1
      %s92 = scalar_select %p89, %s90, %s91
      %p95 = pneg %p89
      %p96 = scmp.eq.s32.totalorder %s17, 1
      %p97 = por %p95, %p96
      %p98 = scmp.ne.s32.totalorder %s90, %s93
      %p99 = scmp.eq.s32.totalorder %s17, 0
      %p100 = por %p98, %p99
      %p101 = scmp.ne.s32.totalorder %s90, %s93
      %p102 = scmp.eq.s32.totalorder %s22, 1
      %p103 = por %p101, %p102
      %p104 = scmp.ne.s32.totalorder %s93, %s94
      %p105 = scmp.eq.s32.totalorder %s22, 0
      %p106 = por %p104, %p105
      %p107 = scmp.ne.s32.totalorder %s93, %s94
      %p108 = scmp.eq.s32.totalorder %s23, 1
      %p109 = por %p107, %p108
      %p111 = scmp.ne.s32.totalorder %s94, %s110
      %p112 = scmp.eq.s32.totalorder %s23, 0
      %p113 = por %p111, %p112
      %s114 = ssub.s32 %s24, %s36
      %s115 = ssub.s32 %s25, %s32
      %s116 = sor.u32 %s114, %s115
      %p117 = scmp.eq.s32.totalorder %s116, 0
      %s119 = sadd.s32 %s118, 1
      %s120 = scalar_select %p117, %s118, %s119
      %p123 = pneg %p117
      %p124 = scmp.eq.s32.totalorder %s17, 1
      %p125 = por %p123, %p124
      %p126 = scmp.ne.s32.totalorder %s118, %s121
      %p127 = scmp.eq.s32.totalorder %s17, 0
      %p128 = por %p126, %p127
      %p129 = scmp.ne.s32.totalorder %s118, %s121
      %p130 = scmp.eq.s32.totalorder %s22, 1
      %p131 = por %p129, %p130
      %p132 = scmp.ne.s32.totalorder %s121, %s122
      %p133 = scmp.eq.s32.totalorder %s22, 0
      %p134 = por %p132, %p133
      %p135 = scmp.ne.s32.totalorder %s121, %s122
      %p136 = scmp.eq.s32.totalorder %s23, 1
      %p137 = por %p135, %p136
      %p139 = scmp.ne.s32.totalorder %s122, %s138
      %p140 = scmp.eq.s32.totalorder %s23, 0
      %p141 = por %p139, %p140
      %s142 = ssub.s32 %s24, %s36
      %s143 = ssub.s32 %s25, %s32
      %s144 = sor.u32 %s142, %s143
      %p145 = scmp.eq.s32.totalorder %s144, 0
      %s147 = sadd.s32 %s146, 1
      %s148 = scalar_select %p145, %s146, %s147
      %p151 = pneg %p145
      %p152 = scmp.eq.s32.totalorder %s17, 1
      %p153 = por %p151, %p152
      %p154 = scmp.ne.s32.totalorder %s146, %s149
      %p155 = scmp.eq.s32.totalorder %s17, 0
      %p156 = por %p154, %p155
      %p157 = scmp.ne.s32.totalorder %s146, %s149
      %p158 = scmp.eq.s32.totalorder %s22, 1
      %p159 = por %p157, %p158
      %p160 = scmp.ne.s32.totalorder %s149, %s150
      %p161 = scmp.eq.s32.totalorder %s22, 0
      %p162 = por %p160, %p161
      %p163 = scmp.ne.s32.totalorder %s149, %s150
      %p164 = scmp.eq.s32.totalorder %s23, 1
      %p165 = por %p163, %p164
      %p167 = scmp.ne.s32.totalorder %s150, %s166
      %p168 = scmp.eq.s32.totalorder %s23, 0
      %p169 = por %p167, %p168
      %p170 = scmp.le.s32.totalorder 1, %s17
      %p171 = scmp.lt.s32.totalorder %s17, 3
      %p172 = pnand %p170, %p171
      %p173 = pneg %p172
      // Predicated region
      $region9: #{tpu_custom_call.1} parent=5 // pred_check
        _
      $region10: #{tpu_custom_call.1} parent=5 // pred_check_branch
        %175 = sbr.rel (%p172) target = $region12
      $region11: #{tpu_custom_call.1} parent=5 // pred_region
        %s176 = ssub.s32 %s17, 1
        // Predicated region
        $region13: #{tpu_custom_call.1} parent=11 // pred_check
          %p177 = pneg %p78
        $region14: #{tpu_custom_call.1} parent=11 // pred_check_branch
          %179 = sbr.rel (%p177) target = $region16
        $region15: #{tpu_custom_call.1} parent=11 // pred_region
          _
        $region16: #{tpu_custom_call.1} parent=11 // pred_fallthru
          _
      $region12: #{tpu_custom_call.1} parent=5 // pred_fallthru
        _
      %p180 = scmp.lt.s32.totalorder %s17, 2
      // Predicated region
      $region17: #{tpu_custom_call.1} parent=5 // pred_check
        %p181 = pneg %p180
      $region18: #{tpu_custom_call.1} parent=5 // pred_check_branch
        %183 = sbr.rel (%p181) target = $region20
      $region19: #{tpu_custom_call.1} parent=5 // pred_region
        // Predicated region
        $region21: #{tpu_custom_call.1} parent=19 // pred_check
          %p184 = pneg %p51
        $region22: #{tpu_custom_call.1} parent=19 // pred_check_branch
          %186 = sbr.rel (%p184) target = $region24
        $region23: #{tpu_custom_call.1} parent=19 // pred_region
          %s187 = smul.u32 32, %s25
          %p188 = scmp.lt.s32.totalorder %s24, 1
          %s189 = scalar_select %p188, %s24, 1
          %p190 = scmp.lt.s32.totalorder %s187, 31
          %s191 = scalar_select %p190, %s187, 31
          %s192 = smul.addr %s189, 32
          %s193 = sadd.s32 %s191, %s192
          %s194 = smul.addr %s193, 4
          %s195 = scalar_lea.vmem %s0, %s194
          %s196 = smul.u32 32, %s25
        $region24: #{tpu_custom_call.1} parent=19 // pred_fallthru
          _
        // Predicated region
        $region25: #{tpu_custom_call.1} parent=19 // pred_check
          %p197 = pneg %p100
        $region26: #{tpu_custom_call.1} parent=19 // pred_check_branch
          %199 = sbr.rel (%p197) target = $region28
        $region27: #{tpu_custom_call.1} parent=19 // pred_region
          %s200 = smul.u32 32, %s25
          %p201 = scmp.lt.s32.totalorder %s24, 1
          %s202 = scalar_select %p201, %s24, 1
          %p203 = scmp.lt.s32.totalorder %s200, 31
          %s204 = scalar_select %p203, %s200, 31
          %s205 = smul.addr %s202, 32
          %s206 = sadd.s32 %s204, %s205
          %s207 = smul.addr %s206, 8
          %s208 = scalar_lea.vmem %s2, %s207
          %s209 = smul.u32 32, %s25
        $region28: #{tpu_custom_call.1} parent=19 // pred_fallthru
          _
      $region20: #{tpu_custom_call.1} parent=5 // pred_fallthru
        _
      %p210 = scmp.le.s32.totalorder 1, %s17
      %p211 = scmp.lt.s32.totalorder %s17, 3
      %p212 = pnand %p210, %p211
      %p213 = pneg %p212
      // Predicated region
      $region29: #{tpu_custom_call.1} parent=5 // pred_check
        _
      $region30: #{tpu_custom_call.1} parent=5 // pred_check_branch
        %215 = sbr.rel (%p212) target = $region32
      $region31: #{tpu_custom_call.1} parent=5 // pred_region
        %s216 = ssub.s32 %s17, 1
        %s217 = smul.u32 32, %s27
        %p218 = scmp.lt.s32.totalorder %s26, 1
        %s219 = scalar_select %p218, %s26, 1
        %p220 = scmp.lt.s32.totalorder %s217, 31
        %s221 = scalar_select %p220, %s217, 31
        %s222 = smul.addr %s219, 32
        %s223 = sadd.s32 %s221, %s222
        %s224 = smul.addr %s223, 4
        %s225 = scalar_lea.vmem %s0, %s224
        %p226 = pneg %p57
        %p227 = pneg %p54
        %p228 = pneg %p78
        %p229 = pneg %p75
        %s230 = smul.u32 32, %s27
        %p231 = scmp.lt.s32.totalorder %s26, 1
        %s232 = scalar_select %p231, %s26, 1
        %p233 = scmp.lt.s32.totalorder %s230, 31
        %s234 = scalar_select %p233, %s230, 31
        %s235 = smul.addr %s232, 32
        %s236 = sadd.s32 %s234, %s235
        %s237 = smul.addr %s236, 8
        %s238 = scalar_lea.vmem %s2, %s237
        %p239 = pneg %p106
        %p240 = pneg %p103
        %p241 = pneg %p134
        %p242 = pneg %p131
        %s243 = sand.u32 %s121, 1
        %s244 = scalar_lea.sflag [#allocation3], %s243
        %s245 = sand.u32 %s121, 1
        %s246 = smul.addr %s245, 128
        %s247 = scalar_lea.vmem [#allocation2], %s246
        %p248 = pneg %p162
        %p249 = pneg %p159
        %s250 = sand.u32 %s149, 1
        %s251 = scalar_lea.sflag [#allocation5], %s250
        %s252 = sand.u32 %s149, 1
        %s253 = smul.addr %s252, 8
        %s254 = scalar_lea.vmem [#allocation4], %s253
        %s255 = smul.u32 32, %s27
        %p256 = scmp.lt.s32.totalorder %s26, 1
        %s257 = scalar_select %p256, %s26, 1
        %p258 = scmp.lt.s32.totalorder %s255, 31
        %s259 = scalar_select %p258, %s255, 31
        %s260 = smul.addr %s257, 32
        %s261 = sadd.s32 %s259, %s260
        %s262 = smul.addr %s261, 4
        %s263 = scalar_lea.vmem %s0, %s262
        %s264 = smul.u32 32, %s27
        %s265 = smul.u32 32, %s27
        %p266 = scmp.lt.s32.totalorder %s26, 1
        %s267 = scalar_select %p266, %s26, 1
        %p268 = scmp.lt.s32.totalorder %s265, 31
        %s269 = scalar_select %p268, %s265, 31
        %s270 = smul.addr %s267, 32
        %s271 = sadd.s32 %s269, %s270
        %s272 = smul.addr %s271, 8
        %s273 = scalar_lea.vmem %s2, %s272
        %s274 = smul.u32 32, %s27
        %s275 = smul.u32 32, %s27
        %v277 = vld [vmem:[%s263] sm:$0xf]
        %v278 = vld [vmem:[%s263 + $0x4] sm:$0xf]
        %v279 = vld [vmem:[%s263 + $0x8] sm:$0xf]
        %v280 = vld [vmem:[%s263 + $0xc] sm:$0xf]
        %v281 = vld [vmem:[%s263 + $0x10] sm:$0xf]
        %v282 = vld [vmem:[%s263 + $0x14] sm:$0xf]
        %v283 = vld [vmem:[%s263 + $0x18] sm:$0xf]
        %v284 = vld [vmem:[%s263 + $0x1c] sm:$0xf]
        %v285 = vld [vmem:[%s263 + $0x20] sm:$0xf]
        %v286 = vld [vmem:[%s263 + $0x24] sm:$0xf]
        %v287 = vld [vmem:[%s263 + $0x28] sm:$0xf]
        %v288 = vld [vmem:[%s263 + $0x2c] sm:$0xf]
        %v289 = vld [vmem:[%s263 + $0x30] sm:$0xf]
        %v290 = vld [vmem:[%s263 + $0x34] sm:$0xf]
        %v291 = vld [vmem:[%s263 + $0x38] sm:$0xf]
        %v292 = vld [vmem:[%s263 + $0x3c] sm:$0xf]
        %v293 = vld [vmem:[%s263 + $0x40] sm:$0xf]
        %v294 = vld [vmem:[%s263 + $0x44] sm:$0xf]
        %v295 = vld [vmem:[%s263 + $0x48] sm:$0xf]
        %v296 = vld [vmem:[%s263 + $0x4c] sm:$0xf]
        %v297 = vld [vmem:[%s263 + $0x50] sm:$0xf]
        %v298 = vld [vmem:[%s263 + $0x54] sm:$0xf]
        %v299 = vld [vmem:[%s263 + $0x58] sm:$0xf]
        %v300 = vld [vmem:[%s263 + $0x5c] sm:$0xf]
        %v301 = vld [vmem:[%s263 + $0x60] sm:$0xf]
        %v302 = vld [vmem:[%s263 + $0x64] sm:$0xf]
        %v303 = vld [vmem:[%s263 + $0x68] sm:$0xf]
        %v304 = vld [vmem:[%s263 + $0x6c] sm:$0xf]
        %v305 = vld [vmem:[%s263 + $0x70] sm:$0xf]
        %v306 = vld [vmem:[%s263 + $0x74] sm:$0xf]
        %v307 = vld [vmem:[%s263 + $0x78] sm:$0xf]
        %v308 = vld [vmem:[%s263 + $0x7c] sm:$0xf]
        %v309 = vld [vmem:[%s1] sm:$0xf]
        %v310 = vld [vmem:[%s1 + $0x4] sm:$0xf]
        %v311 = vld [vmem:[%s1 + $0x8] sm:$0xf]
        %v312 = vld [vmem:[%s1 + $0xc] sm:$0xf]
        %v313 = vld [vmem:[%s1 + $0x10] sm:$0xf]
        %v314 = vld [vmem:[%s1 + $0x14] sm:$0xf]
        %v315 = vld [vmem:[%s1 + $0x18] sm:$0xf]
        %v316 = vld [vmem:[%s1 + $0x1c] sm:$0xf]
        %v317 = vld [vmem:[%s1 + $0x20] sm:$0xf]
        %v318 = vld [vmem:[%s1 + $0x24] sm:$0xf]
        %v319 = vld [vmem:[%s1 + $0x28] sm:$0xf]
        %v320 = vld [vmem:[%s1 + $0x2c] sm:$0xf]
        %v321 = vld [vmem:[%s1 + $0x30] sm:$0xf]
        %v322 = vld [vmem:[%s1 + $0x34] sm:$0xf]
        %v323 = vld [vmem:[%s1 + $0x38] sm:$0xf]
        %v324 = vld [vmem:[%s1 + $0x3c] sm:$0xf]
        %v357 = vunpack.c.l.b16 %v277
        %v358 = vunpack.c.l.b16 %v278
        %v359 = vunpack.c.l.b16 %v279
        %v360 = vunpack.c.l.b16 %v280
        %v361 = vunpack.c.l.b16 %v281
        %v362 = vunpack.c.l.b16 %v282
        %v363 = vunpack.c.l.b16 %v283
        %v364 = vunpack.c.l.b16 %v284
        %v365 = vunpack.c.l.b16 %v285
        %v366 = vunpack.c.l.b16 %v286
        %v367 = vunpack.c.l.b16 %v287
        %v368 = vunpack.c.l.b16 %v288
        %v369 = vunpack.c.l.b16 %v289
        %v370 = vunpack.c.l.b16 %v290
        %v371 = vunpack.c.l.b16 %v291
        %v372 = vunpack.c.l.b16 %v292
        %v373 = vunpack.c.l.b16 %v293
        %v374 = vunpack.c.l.b16 %v294
        %v375 = vunpack.c.l.b16 %v295
        %v376 = vunpack.c.l.b16 %v296
        %v377 = vunpack.c.l.b16 %v297
        %v378 = vunpack.c.l.b16 %v298
        %v379 = vunpack.c.l.b16 %v299
        %v380 = vunpack.c.l.b16 %v300
        %v381 = vunpack.c.l.b16 %v301
        %v382 = vunpack.c.l.b16 %v302
        %v383 = vunpack.c.l.b16 %v303
        %v384 = vunpack.c.l.b16 %v304
        %v385 = vunpack.c.l.b16 %v305
        %v386 = vunpack.c.l.b16 %v306
        %v387 = vunpack.c.l.b16 %v307
        %v388 = vunpack.c.l.b16 %v308
        %v389 = vpack.c.b16 %v358, %v357
        %v390 = vpack.c.b16 %v360, %v359
        %v391 = vpack.c.b16 %v362, %v361
        %v392 = vpack.c.b16 %v364, %v363
        %v393 = vpack.c.b16 %v366, %v365
        %v394 = vpack.c.b16 %v368, %v367
        %v395 = vpack.c.b16 %v370, %v369
        %v396 = vpack.c.b16 %v372, %v371
        %v397 = vpack.c.b16 %v374, %v373
        %v398 = vpack.c.b16 %v376, %v375
        %v399 = vpack.c.b16 %v378, %v377
        %v400 = vpack.c.b16 %v380, %v379
        %v401 = vpack.c.b16 %v382, %v381
        %v402 = vpack.c.b16 %v384, %v383
        %v403 = vpack.c.b16 %v386, %v385
        %v404 = vpack.c.b16 %v388, %v387
        %v437 = vunpack.c.l.b16 %v309
        %v438 = vunpack.c.l.b16 %v310
        %v439 = vunpack.c.l.b16 %v311
        %v440 = vunpack.c.l.b16 %v312
        %v441 = vunpack.c.l.b16 %v313
        %v442 = vunpack.c.l.b16 %v314
        %v443 = vunpack.c.l.b16 %v315
        %v444 = vunpack.c.l.b16 %v316
        %v445 = vunpack.c.l.b16 %v317
        %v446 = vunpack.c.l.b16 %v318
        %v447 = vunpack.c.l.b16 %v319
        %v448 = vunpack.c.l.b16 %v320
        %v449 = vunpack.c.l.b16 %v321
        %v450 = vunpack.c.l.b16 %v322
        %v451 = vunpack.c.l.b16 %v323
        %v452 = vunpack.c.l.b16 %v324
        %v453 = vpack.c.b16 %v438, %v437
        %v454 = vpack.c.b16 %v440, %v439
        %v455 = vpack.c.b16 %v442, %v441
        %v456 = vpack.c.b16 %v444, %v443
        %v457 = vpack.c.b16 %v446, %v445
        %v458 = vpack.c.b16 %v448, %v447
        %v459 = vpack.c.b16 %v450, %v449
        %v460 = vpack.c.b16 %v452, %v451
        %469 = vmatprep.subr.bf16.mxu0 0
        %470 = vmatpush1.bf16.msra.mxu0 %v453
        %471 = vmatprep.subr.bf16.mxu0 0
        %472 = vmatpush1.bf16.msra.mxu0 %v454
        %473 = vmatprep.subr.bf16.mxu0 0
        %474 = vmatpush1.bf16.msra.mxu0 %v455
        %475 = vmatprep.subr.bf16.mxu0 0
        %476 = vmatpush1.bf16.msra.mxu0 %v456
        %477 = vmatprep.subr.bf16.mxu0 0
        %478 = vmatpush1.bf16.msra.mxu0 %v457
        %479 = vmatprep.subr.bf16.mxu0 0
        %480 = vmatpush1.bf16.msra.mxu0 %v458
        %481 = vmatprep.subr.bf16.mxu0 0
        %482 = vmatpush1.bf16.msra.mxu0 %v459
        %483 = vmatprep.subr.bf16.mxu0 0
        %484 = vmatpush1.bf16.msra.mxu0 %v460
        %485 = vmatprep.subr.bf16.mxu0 0
        %486 = vmatpush1.bf16.msra.mxu0 0
        %487 = vmatprep.subr.bf16.mxu0 0
        %488 = vmatpush1.bf16.msra.mxu0 0
        %489 = vmatprep.subr.bf16.mxu0 0
        %490 = vmatpush1.bf16.msra.mxu0 0
        %491 = vmatprep.subr.bf16.mxu0 0
        %492 = vmatpush1.bf16.msra.mxu0 0
        %493 = vmatprep.subr.bf16.mxu0 0
        %494 = vmatpush1.bf16.msra.mxu0 0
        %495 = vmatprep.subr.bf16.mxu0 0
        %496 = vmatpush1.bf16.msra.mxu0 0
        %497 = vmatprep.subr.bf16.mxu0 0
        %498 = vmatpush1.bf16.msra.mxu0 0
        %499 = vmatprep.subr.bf16.mxu0 0
        %500 = vmatpush1.bf16.msra.mxu0 0
        %501 = vmatprep.mubr.bf16.mxu0 0
        %502 = vmatmul.mubr.bf16.gmra.mrb[0].mxu0 %v389
        %v503 = vpop.f32.mrb[0].mxu0
        %v504 = vadd.f32 0.0, %v503
        %v505 = vpop.f32.mrb[0].mxu0
        %v506 = vpop.f32.mrb[0].mxu0
        %v507 = vadd.f32 0.0, %v506
        %v508 = vpop.f32.mrb[0].mxu0
        %509 = vmatprep.mubr.bf16.mxu0 0
        %510 = vmatmul.mubr.bf16.gmra.mrb[0].mxu0 %v390
        %v511 = vpop.f32.mrb[0].mxu0
        %v512 = vadd.f32 0.0, %v511
        %v513 = vpop.f32.mrb[0].mxu0
        %v514 = vpop.f32.mrb[0].mxu0
        %v515 = vadd.f32 0.0, %v514
        %v516 = vpop.f32.mrb[0].mxu0
        %517 = vmatprep.mubr.bf16.mxu0 0
        %518 = vmatmul.mubr.bf16.gmra.mrb[0].mxu0 %v391
        %v519 = vpop.f32.mrb[0].mxu0
        %v520 = vadd.f32 0.0, %v519
        %v521 = vpop.f32.mrb[0].mxu0
        %v522 = vpop.f32.mrb[0].mxu0
        %v523 = vadd.f32 0.0, %v522
        %v524 = vpop.f32.mrb[0].mxu0
        %525 = vmatprep.mubr.bf16.mxu0 0
        %526 = vmatmul.mubr.bf16.gmra.mrb[0].mxu0 %v392
        %v527 = vpop.f32.mrb[0].mxu0
        %v528 = vadd.f32 0.0, %v527
        %v529 = vpop.f32.mrb[0].mxu0
        %v530 = vpop.f32.mrb[0].mxu0
        %v531 = vadd.f32 0.0, %v530
        %v532 = vpop.f32.mrb[0].mxu0
        %533 = vmatprep.mubr.bf16.mxu0 0
        %534 = vmatmul.mubr.bf16.gmra.mrb[0].mxu0 %v393
        %v535 = vpop.f32.mrb[0].mxu0
        %v536 = vadd.f32 0.0, %v535
        %v537 = vpop.f32.mrb[0].mxu0
        %v538 = vpop.f32.mrb[0].mxu0
        %v539 = vadd.f32 0.0, %v538
        %v540 = vpop.f32.mrb[0].mxu0
        %541 = vmatprep.mubr.bf16.mxu0 0
        %542 = vmatmul.mubr.bf16.gmra.mrb[0].mxu0 %v394
        %v543 = vpop.f32.mrb[0].mxu0
        %v544 = vadd.f32 0.0, %v543
        %v545 = vpop.f32.mrb[0].mxu0
        %v546 = vpop.f32.mrb[0].mxu0
        %v547 = vadd.f32 0.0, %v546
        %v548 = vpop.f32.mrb[0].mxu0
        %549 = vmatprep.mubr.bf16.mxu0 0
        %550 = vmatmul.mubr.bf16.gmra.mrb[0].mxu0 %v395
        %v551 = vpop.f32.mrb[0].mxu0
        %v552 = vadd.f32 0.0, %v551
        %v553 = vpop.f32.mrb[0].mxu0
        %v554 = vpop.f32.mrb[0].mxu0
        %v555 = vadd.f32 0.0, %v554
        %v556 = vpop.f32.mrb[0].mxu0
        %557 = vmatprep.mubr.bf16.mxu0 0
        %558 = vmatmul.mubr.bf16.gmra.mrb[0].mxu0 %v396
        %v559 = vpop.f32.mrb[0].mxu0
        %v560 = vadd.f32 0.0, %v559
        %v561 = vpop.f32.mrb[0].mxu0
        %v562 = vpop.f32.mrb[0].mxu0
        %v563 = vadd.f32 0.0, %v562
        %v564 = vpop.f32.mrb[0].mxu0
        %565 = vmatprep.mubr.bf16.mxu0 0
        %566 = vmatmul.mubr.bf16.gmra.mrb[0].mxu0 %v397
        %v567 = vpop.f32.mrb[0].mxu0
        %v568 = vadd.f32 0.0, %v567
        %v569 = vpop.f32.mrb[0].mxu0
        %v570 = vpop.f32.mrb[0].mxu0
        %v571 = vadd.f32 0.0, %v570
        %v572 = vpop.f32.mrb[0].mxu0
        %573 = vmatprep.mubr.bf16.mxu0 0
        %574 = vmatmul.mubr.bf16.gmra.mrb[0].mxu0 %v398
        %v575 = vpop.f32.mrb[0].mxu0
        %v576 = vadd.f32 0.0, %v575
        %v577 = vpop.f32.mrb[0].mxu0
        %v578 = vpop.f32.mrb[0].mxu0
        %v579 = vadd.f32 0.0, %v578
        %v580 = vpop.f32.mrb[0].mxu0
        %581 = vmatprep.mubr.bf16.mxu0 0
        %582 = vmatmul.mubr.bf16.gmra.mrb[0].mxu0 %v399
        %v583 = vpop.f32.mrb[0].mxu0
        %v584 = vadd.f32 0.0, %v583
        %v585 = vpop.f32.mrb[0].mxu0
        %v586 = vpop.f32.mrb[0].mxu0
        %v587 = vadd.f32 0.0, %v586
        %v588 = vpop.f32.mrb[0].mxu0
        %589 = vmatprep.mubr.bf16.mxu0 0
        %590 = vmatmul.mubr.bf16.gmra.mrb[0].mxu0 %v400
        %v591 = vpop.f32.mrb[0].mxu0
        %v592 = vadd.f32 0.0, %v591
        %v593 = vpop.f32.mrb[0].mxu0
        %v594 = vpop.f32.mrb[0].mxu0
        %v595 = vadd.f32 0.0, %v594
        %v596 = vpop.f32.mrb[0].mxu0
        %597 = vmatprep.mubr.bf16.mxu0 0
        %598 = vmatmul.mubr.bf16.gmra.mrb[0].mxu0 %v401
        %v599 = vpop.f32.mrb[0].mxu0
        %v600 = vadd.f32 0.0, %v599
        %v601 = vpop.f32.mrb[0].mxu0
        %v602 = vpop.f32.mrb[0].mxu0
        %v603 = vadd.f32 0.0, %v602
        %v604 = vpop.f32.mrb[0].mxu0
        %605 = vmatprep.mubr.bf16.mxu0 0
        %606 = vmatmul.mubr.bf16.gmra.mrb[0].mxu0 %v402
        %v607 = vpop.f32.mrb[0].mxu0
        %v608 = vadd.f32 0.0, %v607
        %v609 = vpop.f32.mrb[0].mxu0
        %v610 = vpop.f32.mrb[0].mxu0
        %v611 = vadd.f32 0.0, %v610
        %v612 = vpop.f32.mrb[0].mxu0
        %613 = vmatprep.mubr.bf16.mxu0 0
        %614 = vmatmul.mubr.bf16.gmra.mrb[0].mxu0 %v403
        %v615 = vpop.f32.mrb[0].mxu0
        %v616 = vadd.f32 0.0, %v615
        %v617 = vpop.f32.mrb[0].mxu0
        %v618 = vpop.f32.mrb[0].mxu0
        %v619 = vadd.f32 0.0, %v618
        %v620 = vpop.f32.mrb[0].mxu0
        %621 = vmatprep.mubr.bf16.mxu0 0
        %622 = vmatmul.mubr.bf16.gmra.mrb[0].mxu0 %v404
        %v623 = vpop.f32.mrb[0].mxu0
        %v624 = vadd.f32 0.0, %v623
        %v625 = vpop.f32.mrb[0].mxu0
        %v626 = vpop.f32.mrb[0].mxu0
        %v627 = vadd.f32 0.0, %v626
        %v628 = vpop.f32.mrb[0].mxu0
        %629 = vdwg.mxu0
        %v630 = vld [vmem:[%s273] sm:$0xff]
        %v631 = vld [vmem:[%s273 + $0x8] sm:$0xff]
        %v632 = vld [vmem:[%s273 + $0x10] sm:$0xff]
        %v633 = vld [vmem:[%s273 + $0x18] sm:$0xff]
        %v634 = vld [vmem:[%s273 + $0x20] sm:$0xff]
        %v635 = vld [vmem:[%s273 + $0x28] sm:$0xff]
        %v636 = vld [vmem:[%s273 + $0x30] sm:$0xff]
        %v637 = vld [vmem:[%s273 + $0x38] sm:$0xff]
        %v638 = vld [vmem:[%s273 + $0x40] sm:$0xff]
        %v639 = vld [vmem:[%s273 + $0x48] sm:$0xff]
        %v640 = vld [vmem:[%s273 + $0x50] sm:$0xff]
        %v641 = vld [vmem:[%s273 + $0x58] sm:$0xff]
        %v642 = vld [vmem:[%s273 + $0x60] sm:$0xff]
        %v643 = vld [vmem:[%s273 + $0x68] sm:$0xff]
        %v644 = vld [vmem:[%s273 + $0x70] sm:$0xff]
        %v645 = vld [vmem:[%s273 + $0x78] sm:$0xff]
        %v646 = vld [vmem:[%s273 + $0x80] sm:$0xff]
        %v647 = vld [vmem:[%s273 + $0x88] sm:$0xff]
        %v648 = vld [vmem:[%s273 + $0x90] sm:$0xff]
        %v649 = vld [vmem:[%s273 + $0x98] sm:$0xff]
        %v650 = vld [vmem:[%s273 + $0xa0] sm:$0xff]
        %v651 = vld [vmem:[%s273 + $0xa8] sm:$0xff]
        %v652 = vld [vmem:[%s273 + $0xb0] sm:$0xff]
        %v653 = vld [vmem:[%s273 + $0xb8] sm:$0xff]
        %v654 = vld [vmem:[%s273 + $0xc0] sm:$0xff]
        %v655 = vld [vmem:[%s273 + $0xc8] sm:$0xff]
        %v656 = vld [vmem:[%s273 + $0xd0] sm:$0xff]
        %v657 = vld [vmem:[%s273 + $0xd8] sm:$0xff]
        %v658 = vld [vmem:[%s273 + $0xe0] sm:$0xff]
        %v659 = vld [vmem:[%s273 + $0xe8] sm:$0xff]
        %v660 = vld [vmem:[%s273 + $0xf0] sm:$0xff]
        %v661 = vld [vmem:[%s273 + $0xf8] sm:$0xff]
        %663 = vset.pattern.permute.xlu0 0
        %664 = vperm.xlu0 %663, %v630
        %v665 = vpop.permute.xlu0 %664
        %668 = vset.pattern.permute.xlu0 0
        %669 = vperm.xlu0 %668, %v631
        %v670 = vpop.permute.xlu0 %669
        %673 = vset.pattern.permute.xlu0 0
        %674 = vperm.xlu0 %673, %v632
        %v675 = vpop.permute.xlu0 %674
        %678 = vset.pattern.permute.xlu0 0
        %679 = vperm.xlu0 %678, %v633
        %v680 = vpop.permute.xlu0 %679
        %683 = vset.pattern.permute.xlu0 0
        %684 = vperm.xlu0 %683, %v634
        %v685 = vpop.permute.xlu0 %684
        %688 = vset.pattern.permute.xlu0 0
        %689 = vperm.xlu0 %688, %v635
        %v690 = vpop.permute.xlu0 %689
        %693 = vset.pattern.permute.xlu0 0
        %694 = vperm.xlu0 %693, %v636
        %v695 = vpop.permute.xlu0 %694
        %698 = vset.pattern.permute.xlu0 0
        %699 = vperm.xlu0 %698, %v637
        %v700 = vpop.permute.xlu0 %699
        %703 = vset.pattern.permute.xlu0 0
        %704 = vperm.xlu0 %703, %v638
        %v705 = vpop.permute.xlu0 %704
        %708 = vset.pattern.permute.xlu0 0
        %709 = vperm.xlu0 %708, %v639
        %v710 = vpop.permute.xlu0 %709
        %713 = vset.pattern.permute.xlu0 0
        %714 = vperm.xlu0 %713, %v640
        %v715 = vpop.permute.xlu0 %714
        %718 = vset.pattern.permute.xlu0 0
        %719 = vperm.xlu0 %718, %v641
        %v720 = vpop.permute.xlu0 %719
        %723 = vset.pattern.permute.xlu0 0
        %724 = vperm.xlu0 %723, %v642
        %v725 = vpop.permute.xlu0 %724
        %728 = vset.pattern.permute.xlu0 0
        %729 = vperm.xlu0 %728, %v643
        %v730 = vpop.permute.xlu0 %729
        %733 = vset.pattern.permute.xlu0 0
        %734 = vperm.xlu0 %733, %v644
        %v735 = vpop.permute.xlu0 %734
        %738 = vset.pattern.permute.xlu0 0
        %739 = vperm.xlu0 %738, %v645
        %v740 = vpop.permute.xlu0 %739
        %743 = vset.pattern.permute.xlu0 0
        %744 = vperm.xlu0 %743, %v646
        %v745 = vpop.permute.xlu0 %744
        %748 = vset.pattern.permute.xlu0 0
        %749 = vperm.xlu0 %748, %v647
        %v750 = vpop.permute.xlu0 %749
        %753 = vset.pattern.permute.xlu0 0
        %754 = vperm.xlu0 %753, %v648
        %v755 = vpop.permute.xlu0 %754
        %758 = vset.pattern.permute.xlu0 0
        %759 = vperm.xlu0 %758, %v649
        %v760 = vpop.permute.xlu0 %759
        %763 = vset.pattern.permute.xlu0 0
        %764 = vperm.xlu0 %763, %v650
        %v765 = vpop.permute.xlu0 %764
        %768 = vset.pattern.permute.xlu0 0
        %769 = vperm.xlu0 %768, %v651
        %v770 = vpop.permute.xlu0 %769
        %773 = vset.pattern.permute.xlu0 0
        %774 = vperm.xlu0 %773, %v652
        %v775 = vpop.permute.xlu0 %774
        %778 = vset.pattern.permute.xlu0 0
        %779 = vperm.xlu0 %778, %v653
        %v780 = vpop.permute.xlu0 %779
        %783 = vset.pattern.permute.xlu0 0
        %784 = vperm.xlu0 %783, %v654
        %v785 = vpop.permute.xlu0 %784
        %788 = vset.pattern.permute.xlu0 0
        %789 = vperm.xlu0 %788, %v655
        %v790 = vpop.permute.xlu0 %789
        %793 = vset.pattern.permute.xlu0 0
        %794 = vperm.xlu0 %793, %v656
        %v795 = vpop.permute.xlu0 %794
        %798 = vset.pattern.permute.xlu0 0
        %799 = vperm.xlu0 %798, %v657
        %v800 = vpop.permute.xlu0 %799
        %803 = vset.pattern.permute.xlu0 0
        %804 = vperm.xlu0 %803, %v658
        %v805 = vpop.permute.xlu0 %804
        %808 = vset.pattern.permute.xlu0 0
        %809 = vperm.xlu0 %808, %v659
        %v810 = vpop.permute.xlu0 %809
        %813 = vset.pattern.permute.xlu0 0
        %814 = vperm.xlu0 %813, %v660
        %v815 = vpop.permute.xlu0 %814
        %818 = vset.pattern.permute.xlu0 0
        %819 = vperm.xlu0 %818, %v661
        %v820 = vpop.permute.xlu0 %819
        %v822 = vmul.f32 %v504, %v665
        %v823 = vmul.f32 %v507, %v670
        %v824 = vmul.f32 %v512, %v675
        %v825 = vmul.f32 %v515, %v680
        %v826 = vmul.f32 %v520, %v685
        %v827 = vmul.f32 %v523, %v690
        %v828 = vmul.f32 %v528, %v695
        %v829 = vmul.f32 %v531, %v700
        %v830 = vmul.f32 %v536, %v705
        %v831 = vmul.f32 %v539, %v710
        %v832 = vmul.f32 %v544, %v715
        %v833 = vmul.f32 %v547, %v720
        %v834 = vmul.f32 %v552, %v725
        %v835 = vmul.f32 %v555, %v730
        %v836 = vmul.f32 %v560, %v735
        %v837 = vmul.f32 %v563, %v740
        %v838 = vmul.f32 %v568, %v745
        %v839 = vmul.f32 %v571, %v750
        %v840 = vmul.f32 %v576, %v755
        %v841 = vmul.f32 %v579, %v760
        %v842 = vmul.f32 %v584, %v765
        %v843 = vmul.f32 %v587, %v770
        %v844 = vmul.f32 %v592, %v775
        %v845 = vmul.f32 %v595, %v780
        %v846 = vmul.f32 %v600, %v785
        %v847 = vmul.f32 %v603, %v790
        %v848 = vmul.f32 %v608, %v795
        %v849 = vmul.f32 %v611, %v800
        %v850 = vmul.f32 %v616, %v805
        %v851 = vmul.f32 %v619, %v810
        %v852 = vmul.f32 %v624, %v815
        %v853 = vmul.f32 %v627, %v820
        %v854 = vadd.f32 %v822, %v823
        %v855 = vadd.f32 %v854, %v824
        %v856 = vadd.f32 %v855, %v825
        %v857 = vadd.f32 %v856, %v826
        %v858 = vadd.f32 %v857, %v827
        %v859 = vadd.f32 %v858, %v828
        %v860 = vadd.f32 %v859, %v829
        %v861 = vadd.f32 %v860, %v830
        %v862 = vadd.f32 %v861, %v831
        %v863 = vadd.f32 %v862, %v832
        %v864 = vadd.f32 %v863, %v833
        %v865 = vadd.f32 %v864, %v834
        %v866 = vadd.f32 %v865, %v835
        %v867 = vadd.f32 %v866, %v836
        %v868 = vadd.f32 %v867, %v837
        %v869 = vadd.f32 %v868, %v838
        %v870 = vadd.f32 %v869, %v839
        %v871 = vadd.f32 %v870, %v840
        %v872 = vadd.f32 %v871, %v841
        %v873 = vadd.f32 %v872, %v842
        %v874 = vadd.f32 %v873, %v843
        %v875 = vadd.f32 %v874, %v844
        %v876 = vadd.f32 %v875, %v845
        %v877 = vadd.f32 %v876, %v846
        %v878 = vadd.f32 %v877, %v847
        %v879 = vadd.f32 %v878, %v848
        %v880 = vadd.f32 %v879, %v849
        %v881 = vadd.f32 %v880, %v850
        %v882 = vadd.f32 %v881, %v851
        %v883 = vadd.f32 %v882, %v852
        %v884 = vadd.f32 %v883, %v853
        %v885 = vrot.slane %v884, 4
        %v886 = vadd.f32 %v884, %v885
        %v887 = vrot.slane %v886, 2
        %v888 = vadd.f32 %v886, %v887
        %v889 = vrot.slane %v888, 1
        %v890 = vadd.f32 %v888, %v889
        %v891 = vmul.f32 %v822, %v822
        %v892 = vmul.f32 %v823, %v823
        %v893 = vmul.f32 %v824, %v824
        %v894 = vmul.f32 %v825, %v825
        %v895 = vmul.f32 %v826, %v826
        %v896 = vmul.f32 %v827, %v827
        %v897 = vmul.f32 %v828, %v828
        %v898 = vmul.f32 %v829, %v829
        %v899 = vmul.f32 %v830, %v830
        %v900 = vmul.f32 %v831, %v831
        %v901 = vmul.f32 %v832, %v832
        %v902 = vmul.f32 %v833, %v833
        %v903 = vmul.f32 %v834, %v834
        %v904 = vmul.f32 %v835, %v835
        %v905 = vmul.f32 %v836, %v836
        %v906 = vmul.f32 %v837, %v837
        %v907 = vmul.f32 %v838, %v838
        %v908 = vmul.f32 %v839, %v839
        %v909 = vmul.f32 %v840, %v840
        %v910 = vmul.f32 %v841, %v841
        %v911 = vmul.f32 %v842, %v842
        %v912 = vmul.f32 %v843, %v843
        %v913 = vmul.f32 %v844, %v844
        %v914 = vmul.f32 %v845, %v845
        %v915 = vmul.f32 %v846, %v846
        %v916 = vmul.f32 %v847, %v847
        %v917 = vmul.f32 %v848, %v848
        %v918 = vmul.f32 %v849, %v849
        %v919 = vmul.f32 %v850, %v850
        %v920 = vmul.f32 %v851, %v851
        %v921 = vmul.f32 %v852, %v852
        %v922 = vmul.f32 %v853, %v853
        %v923 = vadd.f32 %v891, %v892
        %v924 = vadd.f32 %v923, %v893
        %v925 = vadd.f32 %v924, %v894
        %v926 = vadd.f32 %v925, %v895
        %v927 = vadd.f32 %v926, %v896
        %v928 = vadd.f32 %v927, %v897
        %v929 = vadd.f32 %v928, %v898
        %v930 = vadd.f32 %v929, %v899
        %v931 = vadd.f32 %v930, %v900
        %v932 = vadd.f32 %v931, %v901
        %v933 = vadd.f32 %v932, %v902
        %v934 = vadd.f32 %v933, %v903
        %v935 = vadd.f32 %v934, %v904
        %v936 = vadd.f32 %v935, %v905
        %v937 = vadd.f32 %v936, %v906
        %v938 = vadd.f32 %v937, %v907
        %v939 = vadd.f32 %v938, %v908
        %v940 = vadd.f32 %v939, %v909
        %v941 = vadd.f32 %v940, %v910
        %v942 = vadd.f32 %v941, %v911
        %v943 = vadd.f32 %v942, %v912
        %v944 = vadd.f32 %v943, %v913
        %v945 = vadd.f32 %v944, %v914
        %v946 = vadd.f32 %v945, %v915
        %v947 = vadd.f32 %v946, %v916
        %v948 = vadd.f32 %v947, %v917
        %v949 = vadd.f32 %v948, %v918
        %v950 = vadd.f32 %v949, %v919
        %v951 = vadd.f32 %v950, %v920
        %v952 = vadd.f32 %v951, %v921
        %v953 = vadd.f32 %v952, %v922
        %v954 = vrot.slane %v953, 4
        %v955 = vadd.f32 %v953, %v954
        %v956 = vrot.slane %v955, 2
        %v957 = vadd.f32 %v955, %v956
        %v958 = vrot.slane %v957, 1
        %v959 = vadd.f32 %v957, %v958
        %v960 = vlaneseq
        %v961 = vshrl.u32 %v960, 7
        %vm962 = vcmp.eq.s32.totalorder %v961, 0
        %vm963 = vcmp.eq.s32.totalorder %v961, 1
        %v964 = vsel %vm963, %v959, 0.0
        %v965 = vsel %vm962, %v890, %v964
        %966 = vst [vmem:[%s254] sm:$0xff] %v965
        %v967 = vpack.c.bf16 %v823, %v822
        %v968 = vpack.c.bf16 %v825, %v824
        %v969 = vpack.c.bf16 %v827, %v826
        %v970 = vpack.c.bf16 %v829, %v828
        %v971 = vpack.c.bf16 %v831, %v830
        %v972 = vpack.c.bf16 %v833, %v832
        %v973 = vpack.c.bf16 %v835, %v834
        %v974 = vpack.c.bf16 %v837, %v836
        %v975 = vpack.c.bf16 %v839, %v838
        %v976 = vpack.c.bf16 %v841, %v840
        %v977 = vpack.c.bf16 %v843, %v842
        %v978 = vpack.c.bf16 %v845, %v844
        %v979 = vpack.c.bf16 %v847, %v846
        %v980 = vpack.c.bf16 %v849, %v848
        %v981 = vpack.c.bf16 %v851, %v850
        %v982 = vpack.c.bf16 %v853, %v852
        %v999 = vunpack.c.l.b16 %v967
        %v1000 = vunpack.c.h.b16 %v967
        %v1001 = vunpack.c.l.b16 %v968
        %v1002 = vunpack.c.h.b16 %v968
        %v1003 = vunpack.c.l.b16 %v969
        %v1004 = vunpack.c.h.b16 %v969
        %v1005 = vunpack.c.l.b16 %v970
        %v1006 = vunpack.c.h.b16 %v970
        %v1007 = vunpack.c.l.b16 %v971
        %v1008 = vunpack.c.h.b16 %v971
        %v1009 = vunpack.c.l.b16 %v972
        %v1010 = vunpack.c.h.b16 %v972
        %v1011 = vunpack.c.l.b16 %v973
        %v1012 = vunpack.c.h.b16 %v973
        %v1013 = vunpack.c.l.b16 %v974
        %v1014 = vunpack.c.h.b16 %v974
        %v1015 = vunpack.c.l.b16 %v975
        %v1016 = vunpack.c.h.b16 %v975
        %v1017 = vunpack.c.l.b16 %v976
        %v1018 = vunpack.c.h.b16 %v976
        %v1019 = vunpack.c.l.b16 %v977
        %v1020 = vunpack.c.h.b16 %v977
        %v1021 = vunpack.c.l.b16 %v978
        %v1022 = vunpack.c.h.b16 %v978
        %v1023 = vunpack.c.l.b16 %v979
        %v1024 = vunpack.c.h.b16 %v979
        %v1025 = vunpack.c.l.b16 %v980
        %v1026 = vunpack.c.h.b16 %v980
        %v1027 = vunpack.c.l.b16 %v981
        %v1028 = vunpack.c.h.b16 %v981
        %v1029 = vunpack.c.l.b16 %v982
        %v1030 = vunpack.c.h.b16 %v982
        %v1031 = vpack.c.b16 %v999, %v999
        %v1032 = vpack.c.b16 %v1000, %v1000
        %v1033 = vpack.c.b16 %v1001, %v1001
        %v1034 = vpack.c.b16 %v1002, %v1002
        %v1035 = vpack.c.b16 %v1003, %v1003
        %v1036 = vpack.c.b16 %v1004, %v1004
        %v1037 = vpack.c.b16 %v1005, %v1005
        %v1038 = vpack.c.b16 %v1006, %v1006
        %v1039 = vpack.c.b16 %v1007, %v1007
        %v1040 = vpack.c.b16 %v1008, %v1008
        %v1041 = vpack.c.b16 %v1009, %v1009
        %v1042 = vpack.c.b16 %v1010, %v1010
        %v1043 = vpack.c.b16 %v1011, %v1011
        %v1044 = vpack.c.b16 %v1012, %v1012
        %v1045 = vpack.c.b16 %v1013, %v1013
        %v1046 = vpack.c.b16 %v1014, %v1014
        %v1047 = vpack.c.b16 %v1015, %v1015
        %v1048 = vpack.c.b16 %v1016, %v1016
        %v1049 = vpack.c.b16 %v1017, %v1017
        %v1050 = vpack.c.b16 %v1018, %v1018
        %v1051 = vpack.c.b16 %v1019, %v1019
        %v1052 = vpack.c.b16 %v1020, %v1020
        %v1053 = vpack.c.b16 %v1021, %v1021
        %v1054 = vpack.c.b16 %v1022, %v1022
        %v1055 = vpack.c.b16 %v1023, %v1023
        %v1056 = vpack.c.b16 %v1024, %v1024
        %v1057 = vpack.c.b16 %v1025, %v1025
        %v1058 = vpack.c.b16 %v1026, %v1026
        %v1059 = vpack.c.b16 %v1027, %v1027
        %v1060 = vpack.c.b16 %v1028, %v1028
        %v1061 = vpack.c.b16 %v1029, %v1029
        %v1062 = vpack.c.b16 %v1030, %v1030
        %1095 = vst [vmem:[%s247] sm:$0xf] %v1031
        %1096 = vst [vmem:[%s247 + $0x4] sm:$0xf] %v1032
        %1097 = vst [vmem:[%s247 + $0x8] sm:$0xf] %v1033
        %1098 = vst [vmem:[%s247 + $0xc] sm:$0xf] %v1034
        %1099 = vst [vmem:[%s247 + $0x10] sm:$0xf] %v1035
        %1100 = vst [vmem:[%s247 + $0x14] sm:$0xf] %v1036
        %1101 = vst [vmem:[%s247 + $0x18] sm:$0xf] %v1037
        %1102 = vst [vmem:[%s247 + $0x1c] sm:$0xf] %v1038
        %1103 = vst [vmem:[%s247 + $0x20] sm:$0xf] %v1039
        %1104 = vst [vmem:[%s247 + $0x24] sm:$0xf] %v1040
        %1105 = vst [vmem:[%s247 + $0x28] sm:$0xf] %v1041
        %1106 = vst [vmem:[%s247 + $0x2c] sm:$0xf] %v1042
        %1107 = vst [vmem:[%s247 + $0x30] sm:$0xf] %v1043
        %1108 = vst [vmem:[%s247 + $0x34] sm:$0xf] %v1044
        %1109 = vst [vmem:[%s247 + $0x38] sm:$0xf] %v1045
        %1110 = vst [vmem:[%s247 + $0x3c] sm:$0xf] %v1046
        %1111 = vst [vmem:[%s247 + $0x40] sm:$0xf] %v1047
        %1112 = vst [vmem:[%s247 + $0x44] sm:$0xf] %v1048
        %1113 = vst [vmem:[%s247 + $0x48] sm:$0xf] %v1049
        %1114 = vst [vmem:[%s247 + $0x4c] sm:$0xf] %v1050
        %1115 = vst [vmem:[%s247 + $0x50] sm:$0xf] %v1051
        %1116 = vst [vmem:[%s247 + $0x54] sm:$0xf] %v1052
        %1117 = vst [vmem:[%s247 + $0x58] sm:$0xf] %v1053
        %1118 = vst [vmem:[%s247 + $0x5c] sm:$0xf] %v1054
        %1119 = vst [vmem:[%s247 + $0x60] sm:$0xf] %v1055
        %1120 = vst [vmem:[%s247 + $0x64] sm:$0xf] %v1056
        %1121 = vst [vmem:[%s247 + $0x68] sm:$0xf] %v1057
        %1122 = vst [vmem:[%s247 + $0x6c] sm:$0xf] %v1058
        %1123 = vst [vmem:[%s247 + $0x70] sm:$0xf] %v1059
        %1124 = vst [vmem:[%s247 + $0x74] sm:$0xf] %v1060
        %1125 = vst [vmem:[%s247 + $0x78] sm:$0xf] %v1061
        %1126 = vst [vmem:[%s247 + $0x7c] sm:$0xf] %v1062
        %s1127 = sand.u32 %s121, 1
        %s1128 = scalar_lea.sflag [#allocation3], %s1127
        %s1129 = sand.u32 %s121, 1
        %s1130 = smul.addr %s1129, 128
        %s1131 = scalar_lea.vmem [#allocation2], %s1130
        %s1132 = sand.u32 %s149, 1
        %s1133 = scalar_lea.sflag [#allocation5], %s1132
        %s1134 = sand.u32 %s149, 1
        %s1135 = smul.addr %s1134, 8
        %s1136 = scalar_lea.vmem [#allocation4], %s1135
        // Predicated region
        $region33: #{tpu_custom_call.1} parent=31 // pred_check
          %p1137 = pneg %p131
        $region34: #{tpu_custom_call.1} parent=31 // pred_check_branch
          %1139 = sbr.rel (%p1137) target = $region36
        $region35: #{tpu_custom_call.1} parent=31 // pred_region
          %s1140 = smul.u32 32, %s27
          %s1142 = ssub.s32 2048, 2048
          %1143 = vsyncadd %s1128, %s1142
          %s1144 = smul.addr %s26, 32
          %s1145 = sadd.s32 %s1140, %s1144
          %s1146 = smul.addr %s1145, 64
          %s1147 = scalar_lea.hbm %s3, %s1146
          %s1148 = sshll.u32 %s1131, 4
          %s1149 = int_to_ptr.vmem [resolvable:$true] %s1148
          %1154 = dma.vmem_to_hbm [thread:$0]  %s1149, 2048, %s1147, %s1128, 64, 64, 4
        $region36: #{tpu_custom_call.1} parent=31 // pred_fallthru
          _
        // Predicated region
        $region37: #{tpu_custom_call.1} parent=31 // pred_check
          %p1155 = pneg %p159
        $region38: #{tpu_custom_call.1} parent=31 // pred_check_branch
          %1157 = sbr.rel (%p1155) target = $region40
        $region39: #{tpu_custom_call.1} parent=31 // pred_region
          %s1159 = ssub.s32 128, 128
          %1160 = vsyncadd %s1133, %s1159
          %s1161 = sadd.s32 %s27, %s26
          %s1162 = smul.addr %s1161, 128
          %s1163 = scalar_lea.hbm %s4, %s1162
          %s1165 = sshll.u32 %s1136, 4
          %s1166 = int_to_ptr.vmem [resolvable:$true] %s1165
          %1168 = dma.vmem_to_hbm [thread:$0]  %s1166, 128, %s1163, %s1133
        $region40: #{tpu_custom_call.1} parent=31 // pred_fallthru
          _
      $region32: #{tpu_custom_call.1} parent=5 // pred_fallthru
        _
      %p1169 = scmp.le.s32.totalorder 2, %s17
      // Predicated region
      $region41: #{tpu_custom_call.1} parent=5 // pred_check
        %p1170 = pneg %p1169
      $region42: #{tpu_custom_call.1} parent=5 // pred_check_branch
        %1172 = sbr.rel (%p1170) target = $region44
      $region43: #{tpu_custom_call.1} parent=5 // pred_region
        %s1173 = ssub.s32 %s17, 2
        // Predicated region
        $region45: #{tpu_custom_call.1} parent=43 // pred_check
          %p1174 = pneg %p137
        $region46: #{tpu_custom_call.1} parent=43 // pred_check_branch
          %1176 = sbr.rel (%p1174) target = $region48
        $region47: #{tpu_custom_call.1} parent=43 // pred_region
          %s1177 = sand.u32 %s122, 1
          %s1178 = scalar_lea.sflag [#allocation3], %s1177
          %s1179 = sand.u32 %s122, 1
          %s1180 = smul.addr %s1179, 128
          %s1181 = scalar_lea.vmem [#allocation2], %s1180
          %1182 = dma.done %s1178, 2048
        $region48: #{tpu_custom_call.1} parent=43 // pred_fallthru
          _
        // Predicated region
        $region49: #{tpu_custom_call.1} parent=43 // pred_check
          %p1183 = pneg %p165
        $region50: #{tpu_custom_call.1} parent=43 // pred_check_branch
          %1185 = sbr.rel (%p1183) target = $region52
        $region51: #{tpu_custom_call.1} parent=43 // pred_region
          %s1186 = sand.u32 %s150, 1
          %s1187 = scalar_lea.sflag [#allocation5], %s1186
          %s1188 = sand.u32 %s150, 1
          %s1189 = smul.addr %s1188, 8
          %s1190 = scalar_lea.vmem [#allocation4], %s1189
          %1191 = dma.done %s1187, 128
        $region52: #{tpu_custom_call.1} parent=43 // pred_fallthru
          _
      $region44: #{tpu_custom_call.1} parent=5 // pred_fallthru
        _
    $region6: #{tpu_custom_call.1} parent=1 // loop_footer
      %s21 = sadd.s32 1, %s17
    $region7: #{tpu_custom_call.1} parent=1 // loop_footer_branch
      %16 = sbr.rel target = $region3
    $region8: #{tpu_custom_call.1} parent=1 // loop_exit
      _
    %1192 = vsyncpa [#allocation3], 1
    %s1193 = scalar_lea.sflag [#allocation3], 1
    %1194 = vsyncpa %s1193, 1
    %1195 = vsyncpa [#allocation5], 1
    %s1196 = scalar_lea.sflag [#allocation5], 1
    %1197 = vsyncpa %s1196, 1

</llo_original>
